<compile_context>
chip_gen: v7x
topology: tpu7x:2x2x1
jax: 0.10.0
libtpu: 0.0.40
codegen_flags: <defaults>
</compile_context>

<pallas_src>
import functools

import jax
import jax.numpy as jnp
from jax.experimental import pallas as pl
from jax.experimental.pallas import tpu as pltpu

# ---- model hyperparameters (small, consistent with the module's forward) ----
BATCH = 8
INPUT_SIZE = 90
HIDDEN_SIZE = 128          # lane-aligned small stand-in for the module default of 1000
OUTPUT_SIZE = 1
BLOCK_COUNT = 3
NUM_BLOCKS = 1 + BLOCK_COUNT   # input block + hidden blocks

# preprocesser values (module defaults of 0.0 would divide by zero; pick
# deterministic non-degenerate values)
MEAN_FEATURES = 0.5
STD_FEATURES = 2.0
MEAN_TARGET = 1998.4
STD_TARGET = 10.9

BN_EPS = 1e-5
LEAKY_SLOPE = 0.01

# rows in the packed per-channel-vector buffer: [gamma, beta] per block, then the
# output weight row (pre-scaled by std_target).  Linear biases are dead under
# training-mode BN and are not packed at all.
ROW_WOUT = 2 * NUM_BLOCKS          # 8
VEC_ROWS = ROW_WOUT + 1            # 9


# ----------------------------------------------------------------------------
# Kernel
# ----------------------------------------------------------------------------
def linear_model_kernel(x_ref, w_ref, vec_ref, bout_ref, o_ref, *, num_blocks):
    H = HIDDEN_SIZE
    inv_b = 1.0 / BATCH

    # x is zero-padded from 90 -> 128 features (matching zero-padded weight rows);
    # the /std_features preprocessing is folded into the first weight, and the
    # -mean_features shift is cancelled by BatchNorm.
    h = x_ref[...]                                       # (B, 128) f32

    # Linear (no bias: cancelled by BN) -> BatchNorm1d (batch stats) -> LeakyReLU, x4.
    for blk in range(num_blocks):
        w = w_ref[blk * H:(blk + 1) * H, :]              # (128, 128) bf16, static slice
        gamma = vec_ref[2 * blk + 0:2 * blk + 1, :]      # (1, 128)
        beta = vec_ref[2 * blk + 1:2 * blk + 2, :]       # (1, 128)

        z = jnp.dot(h.astype(jnp.bfloat16), w,
                    preferred_element_type=jnp.float32)  # (B, 128) f32

        # single-pass batch statistics (biased variance, matching BN training mode);
        # both sublane reductions depend only on z -> issued back-to-back on the XLU.
        s1 = jnp.sum(z, axis=0, keepdims=True)
        s2 = jnp.sum(z * z, axis=0, keepdims=True)
        mu = s1 * inv_b
        var = s2 * inv_b - mu * mu

        # fused BN affine: scale/shift are (1,128) row ops
        scale = gamma * jax.lax.rsqrt(var + BN_EPS)
        shift = beta - mu * scale
        zn = z * scale + shift

        # LeakyReLU as a single vmax (slope > 0)
        h = jnp.maximum(zn, LEAKY_SLOPE * zn)

    # Output linear (hidden -> 1) with the target de-normalization folded in:
    # VPU multiply + lane reduce instead of an N=1 MXU matmul; bias is an SMEM scalar.
    w_out_row = vec_ref[ROW_WOUT:ROW_WOUT + 1, :]        # (1, 128), already * std_target
    out = jnp.sum(h * w_out_row, axis=-1, keepdims=True) + bout_ref[0, 0]
    o_ref[...] = out                                     # (B, 1)


# ----------------------------------------------------------------------------
# Host-side packing — runs ONCE per parameter set (hoisted off the per-call path).
# ----------------------------------------------------------------------------
def pack_params(params):
    (w_in, b_in, g_in, be_in, w_h, b_h, g_h, be_h, w_out, b_out) = params
    del b_in, b_h  # linear biases are cancelled by training-mode BatchNorm

    # Fold feature scaling into the first Linear: ((x - m)/s) @ W == x @ (W/s) + const,
    # and the per-channel const (from m/s) is cancelled by BN, so only W/s survives.
    w_in_f = w_in / STD_FEATURES

    # Pad K from 90 -> 128 (zero rows; x gets matching zero columns).
    w_in_p = jnp.pad(w_in_f, ((0, HIDDEN_SIZE - INPUT_SIZE), (0, 0)))

    # One contiguous (4*128, 128) bf16 weight buffer for all MXU matmuls.
    w_all = jnp.concatenate(
        [w_in_p] + [w_h[i] for i in range(BLOCK_COUNT)], axis=0
    ).astype(jnp.bfloat16)

    # One (9, 128) f32 buffer for every per-channel vector (gamma/beta x4, w_out row).
    w_out_row = (w_out * STD_TARGET).reshape(1, HIDDEN_SIZE)
    rows = [g_in, be_in]
    for i in range(BLOCK_COUNT):
        rows += [g_h[i], be_h[i]]
    rows += [w_out_row]
    vec = jnp.concatenate(rows, axis=0).astype(jnp.float32)    # (9, 128)

    # Output bias with the target de-normalization folded in, as a (1,1) SMEM scalar.
    b_out_s = (b_out[0:1, 0:1] * STD_TARGET + MEAN_TARGET).astype(jnp.float32)

    return w_all, vec, b_out_s


def make_linear_model_forward(params):
    """Packs parameters once; returns a jitted per-call forward (only pads x)."""
    w_all, vec, b_out_s = pack_params(params)

    def full_spec(a):
        nd = a.ndim
        return pl.BlockSpec(a.shape, lambda *_, nd=nd: (0,) * nd)

    kernel = pl.pallas_call(
        functools.partial(linear_model_kernel, num_blocks=NUM_BLOCKS),
        out_shape=jax.ShapeDtypeStruct((BATCH, OUTPUT_SIZE), jnp.float32),
        grid_spec=pltpu.PrefetchScalarGridSpec(
            num_scalar_prefetch=0,
            grid=(1,),
            in_specs=[
                full_spec(jnp.zeros((BATCH, HIDDEN_SIZE), jnp.float32)),
                full_spec(w_all),
                full_spec(vec),
                pl.BlockSpec(memory_space=pltpu.MemorySpace.SMEM),
            ],
            out_specs=pl.BlockSpec(
                (BATCH, OUTPUT_SIZE), lambda *_: (0, 0)
            ),
        ),
        compiler_params=pltpu.CompilerParams(
            dimension_semantics=("arbitrary",)
        ),
    )

    @jax.jit
    def forward(x):
        # Only per-call host-side work: zero-pad features 90 -> 128 (lane-aligned tile).
        x_pad = jnp.pad(x.astype(jnp.float32),
                        ((0, 0), (0, HIDDEN_SIZE - INPUT_SIZE)))
        return kernel(x_pad, w_all, vec, b_out_s)

    return forward


# ----------------------------------------------------------------------------
# Parameter init + faithful pure-JAX reference (unfolded, with biases, two-pass BN, f32)
# ----------------------------------------------------------------------------
def init_params(key):
    """Deterministic, PyTorch-like init (uniform(-1/sqrt(fan_in), 1/sqrt(fan_in)))."""
    ks = jax.random.split(key, 8)

    def lin_init(k, fan_in, fan_out):
        bound = 1.0 / jnp.sqrt(jnp.float32(fan_in))
        kw, kb = jax.random.split(k)
        w = jax.random.uniform(kw, (fan_in, fan_out), jnp.float32, -bound, bound)
        b = jax.random.uniform(kb, (1, fan_out), jnp.float32, -bound, bound)
        return w, b

    w_in, b_in = lin_init(ks[0], INPUT_SIZE, HIDDEN_SIZE)
    g_in = jnp.ones((1, HIDDEN_SIZE), jnp.float32)
    be_in = jnp.zeros((1, HIDDEN_SIZE), jnp.float32)

    w_h_list, b_h_list = [], []
    for i in range(BLOCK_COUNT):
        w, b = lin_init(ks[1 + i], HIDDEN_SIZE, HIDDEN_SIZE)
        w_h_list.append(w)
        b_h_list.append(b)
    w_h = jnp.stack(w_h_list)                                   # (B_CNT, H, H)
    b_h = jnp.stack(b_h_list)                                   # (B_CNT, 1, H)
    g_h = jnp.ones((BLOCK_COUNT, 1, HIDDEN_SIZE), jnp.float32)
    be_h = jnp.zeros((BLOCK_COUNT, 1, HIDDEN_SIZE), jnp.float32)

    w_out, b_out = lin_init(ks[1 + BLOCK_COUNT], HIDDEN_SIZE, OUTPUT_SIZE)

    return (w_in, b_in, g_in, be_in, w_h, b_h, g_h, be_h, w_out, b_out)


def _ref_linear_block(h, w, b, gamma, beta):
    """Linear (with bias) -> BatchNorm1d (training-mode, two-pass) -> LeakyReLU."""
    z = jnp.dot(h, w) + b
    mu = jnp.mean(z, axis=0, keepdims=True)
    var = jnp.mean((z - mu) ** 2, axis=0, keepdims=True)   # biased variance
    zn = (z - mu) * jax.lax.rsqrt(var + BN_EPS)
    zn = zn * gamma + beta
    return jnp.where(zn >= 0, zn, LEAKY_SLOPE * zn)


def reference_forward(x, params):
    """Pure-JAX f32 reference matching the PyTorch module exactly (biases included)."""
    (w_in, b_in, g_in, be_in, w_h, b_h, g_h, be_h, w_out, b_out) = params
    h = (x - MEAN_FEATURES) / STD_FEATURES
    h = _ref_linear_block(h, w_in, b_in, g_in, be_in)
    for i in range(BLOCK_COUNT):
        h = _ref_linear_block(h, w_h[i], b_h[i], g_h[i], be_h[i])
    out = jnp.dot(h, w_out) + b_out
    return out * STD_TARGET + MEAN_TARGET


if __name__ == "__main__":
    key = jax.random.PRNGKey(0)
    kx, kp = jax.random.split(key)

    x = jax.random.normal(kx, (BATCH, INPUT_SIZE), jnp.float32)
    params = init_params(kp)

    forward = make_linear_model_forward(params)   # packs params once, off the call path
    out = jax.block_until_ready(forward(x))

    ref = reference_forward(x, params)
    assert out.shape == (BATCH, OUTPUT_SIZE)
    # Outputs are ~2000 in magnitude (mean_target fold); rtol dominates the tolerance.
    # bf16 MXU operands introduce <~0.1 absolute deviation here, well inside rtol*|ref|.
    assert jnp.allclose(out, ref, atol=1e-2, rtol=1e-3), (out, ref)

    # TODO(synk): predict()/save()/load() (pandas/DVC/file I/O) and BatchNorm running-stat
    # buffer updates have no Pallas equivalent and are intentionally not implemented.
    print("KERNEL_OK")
</pallas_src>

<mosaic_0001>
module attributes {stable_mosaic.version = 11 : i64} {
  func.func @linear_model_kernel(%arg0: i32, %arg1: memref<8x128xf32, #tpu.memory_space<vmem>>, %arg2: memref<512x128xbf16, #tpu.memory_space<vmem>>, %arg3: memref<9x128xf32, #tpu.memory_space<vmem>>, %arg4: memref<1x1xf32, #tpu.memory_space<smem>>, %arg5: memref<8x1xf32, #tpu.memory_space<vmem>>) attributes {dimension_semantics = [#tpu.dimension_semantics<arbitrary>], iteration_bounds = array<i64: 1>, scalar_prefetch = 0 : i64, scratch_operands = 0 : i64, tpu.core_type = #tpu.core_type<tc>, window_params = [{pipeline_mode = #tpu.pipeline_mode<synchronous>, transform_indices = @transform_0, window_bounds = array<i64: 8, 128>}, {pipeline_mode = #tpu.pipeline_mode<synchronous>, transform_indices = @transform_1, window_bounds = array<i64: 512, 128>}, {pipeline_mode = #tpu.pipeline_mode<synchronous>, transform_indices = @transform_2, window_bounds = array<i64: 9, 128>}, {transform_indices = @transform_3, window_bounds = array<i64: 1, 1>}, {pipeline_mode = #tpu.pipeline_mode<synchronous>, transform_indices = @transform_4, window_bounds = array<i64: 8, 1>}]} {
    %c0 = arith.constant 0 : index
    %c0_0 = arith.constant 0 : index
    %0 = vector.load %arg1[%c0, %c0_0] : memref<8x128xf32, #tpu.memory_space<vmem>>, vector<8x128xf32>
    %c0_1 = arith.constant 0 : index
    %c0_2 = arith.constant 0 : index
    %1 = vector.load %arg2[%c0_1, %c0_2] : memref<512x128xbf16, #tpu.memory_space<vmem>>, vector<128x128xbf16>
    %c0_3 = arith.constant 0 : index
    %c0_4 = arith.constant 0 : index
    %2 = vector.load %arg3[%c0_3, %c0_4] : memref<9x128xf32, #tpu.memory_space<vmem>>, vector<1x128xf32>
    %c1 = arith.constant 1 : index
    %c0_5 = arith.constant 0 : index
    %3 = vector.load %arg3[%c1, %c0_5] : memref<9x128xf32, #tpu.memory_space<vmem>>, vector<1x128xf32>
    %4 = arith.truncf %0 : vector<8x128xf32> to vector<8x128xbf16>
    %cst = arith.constant dense<0.000000e+00> : vector<8x128xf32>
    %5 = tpu.matmul %4, %1, %cst {dimension_numbers = #tpu.dot_dimension_numbers<[1], [0], [0], [1], [0, 0, 1, 1], [], []>} : vector<8x128xbf16>, vector<128x128xbf16>, vector<8x128xf32> -> vector<8x128xf32>
    %cst_6 = arith.constant dense<0.000000e+00> : vector<128xf32>
    %6 = vector.multi_reduction <add>, %5, %cst_6 [0] : vector<8x128xf32> to vector<128xf32>
    %7 = vector.shape_cast %6 : vector<128xf32> to vector<1x128xf32>
    %8 = arith.mulf %5, %5 : vector<8x128xf32>
    %cst_7 = arith.constant dense<0.000000e+00> : vector<128xf32>
    %9 = vector.multi_reduction <add>, %8, %cst_7 [0] : vector<8x128xf32> to vector<128xf32>
    %10 = vector.shape_cast %9 : vector<128xf32> to vector<1x128xf32>
    %cst_8 = arith.constant 1.250000e-01 : f32
    %11 = vector.broadcast %cst_8 : f32 to vector<1x128xf32>
    %12 = arith.mulf %7, %11 : vector<1x128xf32>
    %cst_9 = arith.constant 1.250000e-01 : f32
    %13 = vector.broadcast %cst_9 : f32 to vector<1x128xf32>
    %14 = arith.mulf %10, %13 : vector<1x128xf32>
    %15 = arith.mulf %12, %12 : vector<1x128xf32>
    %16 = arith.subf %14, %15 : vector<1x128xf32>
    %cst_10 = arith.constant 9.99999974E-6 : f32
    %17 = vector.broadcast %cst_10 : f32 to vector<1x128xf32>
    %18 = arith.addf %16, %17 : vector<1x128xf32>
    %19 = math.rsqrt %18 : vector<1x128xf32>
    %20 = arith.mulf %2, %19 : vector<1x128xf32>
    %21 = arith.mulf %12, %20 : vector<1x128xf32>
    %22 = arith.subf %3, %21 : vector<1x128xf32>
    %23 = vector.broadcast %20 : vector<1x128xf32> to vector<8x128xf32>
    %24 = arith.mulf %5, %23 : vector<8x128xf32>
    %25 = vector.broadcast %22 : vector<1x128xf32> to vector<8x128xf32>
    %26 = arith.addf %24, %25 : vector<8x128xf32>
    %cst_11 = arith.constant 0.00999999977 : f32
    %27 = vector.broadcast %cst_11 : f32 to vector<8x128xf32>
    %28 = arith.mulf %27, %26 : vector<8x128xf32>
    %29 = arith.maximumf %26, %28 : vector<8x128xf32>
    %c128 = arith.constant 128 : index
    %c0_12 = arith.constant 0 : index
    %30 = vector.load %arg2[%c128, %c0_12] : memref<512x128xbf16, #tpu.memory_space<vmem>>, vector<128x128xbf16>
    %c2 = arith.constant 2 : index
    %c0_13 = arith.constant 0 : index
    %31 = vector.load %arg3[%c2, %c0_13] : memref<9x128xf32, #tpu.memory_space<vmem>>, vector<1x128xf32>
    %c3 = arith.constant 3 : index
    %c0_14 = arith.constant 0 : index
    %32 = vector.load %arg3[%c3, %c0_14] : memref<9x128xf32, #tpu.memory_space<vmem>>, vector<1x128xf32>
    %33 = arith.truncf %29 : vector<8x128xf32> to vector<8x128xbf16>
    %cst_15 = arith.constant dense<0.000000e+00> : vector<8x128xf32>
    %34 = tpu.matmul %33, %30, %cst_15 {dimension_numbers = #tpu.dot_dimension_numbers<[1], [0], [0], [1], [0, 0, 1, 1], [], []>} : vector<8x128xbf16>, vector<128x128xbf16>, vector<8x128xf32> -> vector<8x128xf32>
    %cst_16 = arith.constant dense<0.000000e+00> : vector<128xf32>
    %35 = vector.multi_reduction <add>, %34, %cst_16 [0] : vector<8x128xf32> to vector<128xf32>
    %36 = vector.shape_cast %35 : vector<128xf32> to vector<1x128xf32>
    %37 = arith.mulf %34, %34 : vector<8x128xf32>
    %cst_17 = arith.constant dense<0.000000e+00> : vector<128xf32>
    %38 = vector.multi_reduction <add>, %37, %cst_17 [0] : vector<8x128xf32> to vector<128xf32>
    %39 = vector.shape_cast %38 : vector<128xf32> to vector<1x128xf32>
    %cst_18 = arith.constant 1.250000e-01 : f32
    %40 = vector.broadcast %cst_18 : f32 to vector<1x128xf32>
    %41 = arith.mulf %36, %40 : vector<1x128xf32>
    %cst_19 = arith.constant 1.250000e-01 : f32
    %42 = vector.broadcast %cst_19 : f32 to vector<1x128xf32>
    %43 = arith.mulf %39, %42 : vector<1x128xf32>
    %44 = arith.mulf %41, %41 : vector<1x128xf32>
    %45 = arith.subf %43, %44 : vector<1x128xf32>
    %cst_20 = arith.constant 9.99999974E-6 : f32
    %46 = vector.broadcast %cst_20 : f32 to vector<1x128xf32>
    %47 = arith.addf %45, %46 : vector<1x128xf32>
    %48 = math.rsqrt %47 : vector<1x128xf32>
    %49 = arith.mulf %31, %48 : vector<1x128xf32>
    %50 = arith.mulf %41, %49 : vector<1x128xf32>
    %51 = arith.subf %32, %50 : vector<1x128xf32>
    %52 = vector.broadcast %49 : vector<1x128xf32> to vector<8x128xf32>
    %53 = arith.mulf %34, %52 : vector<8x128xf32>
    %54 = vector.broadcast %51 : vector<1x128xf32> to vector<8x128xf32>
    %55 = arith.addf %53, %54 : vector<8x128xf32>
    %cst_21 = arith.constant 0.00999999977 : f32
    %56 = vector.broadcast %cst_21 : f32 to vector<8x128xf32>
    %57 = arith.mulf %56, %55 : vector<8x128xf32>
    %58 = arith.maximumf %55, %57 : vector<8x128xf32>
    %c256 = arith.constant 256 : index
    %c0_22 = arith.constant 0 : index
    %59 = vector.load %arg2[%c256, %c0_22] : memref<512x128xbf16, #tpu.memory_space<vmem>>, vector<128x128xbf16>
    %c4 = arith.constant 4 : index
    %c0_23 = arith.constant 0 : index
    %60 = vector.load %arg3[%c4, %c0_23] : memref<9x128xf32, #tpu.memory_space<vmem>>, vector<1x128xf32>
    %c5 = arith.constant 5 : index
    %c0_24 = arith.constant 0 : index
    %61 = vector.load %arg3[%c5, %c0_24] : memref<9x128xf32, #tpu.memory_space<vmem>>, vector<1x128xf32>
    %62 = arith.truncf %58 : vector<8x128xf32> to vector<8x128xbf16>
    %cst_25 = arith.constant dense<0.000000e+00> : vector<8x128xf32>
    %63 = tpu.matmul %62, %59, %cst_25 {dimension_numbers = #tpu.dot_dimension_numbers<[1], [0], [0], [1], [0, 0, 1, 1], [], []>} : vector<8x128xbf16>, vector<128x128xbf16>, vector<8x128xf32> -> vector<8x128xf32>
    %cst_26 = arith.constant dense<0.000000e+00> : vector<128xf32>
    %64 = vector.multi_reduction <add>, %63, %cst_26 [0] : vector<8x128xf32> to vector<128xf32>
    %65 = vector.shape_cast %64 : vector<128xf32> to vector<1x128xf32>
    %66 = arith.mulf %63, %63 : vector<8x128xf32>
    %cst_27 = arith.constant dense<0.000000e+00> : vector<128xf32>
    %67 = vector.multi_reduction <add>, %66, %cst_27 [0] : vector<8x128xf32> to vector<128xf32>
    %68 = vector.shape_cast %67 : vector<128xf32> to vector<1x128xf32>
    %cst_28 = arith.constant 1.250000e-01 : f32
    %69 = vector.broadcast %cst_28 : f32 to vector<1x128xf32>
    %70 = arith.mulf %65, %69 : vector<1x128xf32>
    %cst_29 = arith.constant 1.250000e-01 : f32
    %71 = vector.broadcast %cst_29 : f32 to vector<1x128xf32>
    %72 = arith.mulf %68, %71 : vector<1x128xf32>
    %73 = arith.mulf %70, %70 : vector<1x128xf32>
    %74 = arith.subf %72, %73 : vector<1x128xf32>
    %cst_30 = arith.constant 9.99999974E-6 : f32
    %75 = vector.broadcast %cst_30 : f32 to vector<1x128xf32>
    %76 = arith.addf %74, %75 : vector<1x128xf32>
    %77 = math.rsqrt %76 : vector<1x128xf32>
    %78 = arith.mulf %60, %77 : vector<1x128xf32>
    %79 = arith.mulf %70, %78 : vector<1x128xf32>
    %80 = arith.subf %61, %79 : vector<1x128xf32>
    %81 = vector.broadcast %78 : vector<1x128xf32> to vector<8x128xf32>
    %82 = arith.mulf %63, %81 : vector<8x128xf32>
    %83 = vector.broadcast %80 : vector<1x128xf32> to vector<8x128xf32>
    %84 = arith.addf %82, %83 : vector<8x128xf32>
    %cst_31 = arith.constant 0.00999999977 : f32
    %85 = vector.broadcast %cst_31 : f32 to vector<8x128xf32>
    %86 = arith.mulf %85, %84 : vector<8x128xf32>
    %87 = arith.maximumf %84, %86 : vector<8x128xf32>
    %c384 = arith.constant 384 : index
    %c0_32 = arith.constant 0 : index
    %88 = vector.load %arg2[%c384, %c0_32] : memref<512x128xbf16, #tpu.memory_space<vmem>>, vector<128x128xbf16>
    %c6 = arith.constant 6 : index
    %c0_33 = arith.constant 0 : index
    %89 = vector.load %arg3[%c6, %c0_33] : memref<9x128xf32, #tpu.memory_space<vmem>>, vector<1x128xf32>
    %c7 = arith.constant 7 : index
    %c0_34 = arith.constant 0 : index
    %90 = vector.load %arg3[%c7, %c0_34] : memref<9x128xf32, #tpu.memory_space<vmem>>, vector<1x128xf32>
    %91 = arith.truncf %87 : vector<8x128xf32> to vector<8x128xbf16>
    %cst_35 = arith.constant dense<0.000000e+00> : vector<8x128xf32>
    %92 = tpu.matmul %91, %88, %cst_35 {dimension_numbers = #tpu.dot_dimension_numbers<[1], [0], [0], [1], [0, 0, 1, 1], [], []>} : vector<8x128xbf16>, vector<128x128xbf16>, vector<8x128xf32> -> vector<8x128xf32>
    %cst_36 = arith.constant dense<0.000000e+00> : vector<128xf32>
    %93 = vector.multi_reduction <add>, %92, %cst_36 [0] : vector<8x128xf32> to vector<128xf32>
    %94 = vector.shape_cast %93 : vector<128xf32> to vector<1x128xf32>
    %95 = arith.mulf %92, %92 : vector<8x128xf32>
    %cst_37 = arith.constant dense<0.000000e+00> : vector<128xf32>
    %96 = vector.multi_reduction <add>, %95, %cst_37 [0] : vector<8x128xf32> to vector<128xf32>
    %97 = vector.shape_cast %96 : vector<128xf32> to vector<1x128xf32>
    %cst_38 = arith.constant 1.250000e-01 : f32
    %98 = vector.broadcast %cst_38 : f32 to vector<1x128xf32>
    %99 = arith.mulf %94, %98 : vector<1x128xf32>
    %cst_39 = arith.constant 1.250000e-01 : f32
    %100 = vector.broadcast %cst_39 : f32 to vector<1x128xf32>
    %101 = arith.mulf %97, %100 : vector<1x128xf32>
    %102 = arith.mulf %99, %99 : vector<1x128xf32>
    %103 = arith.subf %101, %102 : vector<1x128xf32>
    %cst_40 = arith.constant 9.99999974E-6 : f32
    %104 = vector.broadcast %cst_40 : f32 to vector<1x128xf32>
    %105 = arith.addf %103, %104 : vector<1x128xf32>
    %106 = math.rsqrt %105 : vector<1x128xf32>
    %107 = arith.mulf %89, %106 : vector<1x128xf32>
    %108 = arith.mulf %99, %107 : vector<1x128xf32>
    %109 = arith.subf %90, %108 : vector<1x128xf32>
    %110 = vector.broadcast %107 : vector<1x128xf32> to vector<8x128xf32>
    %111 = arith.mulf %92, %110 : vector<8x128xf32>
    %112 = vector.broadcast %109 : vector<1x128xf32> to vector<8x128xf32>
    %113 = arith.addf %111, %112 : vector<8x128xf32>
    %cst_41 = arith.constant 0.00999999977 : f32
    %114 = vector.broadcast %cst_41 : f32 to vector<8x128xf32>
    %115 = arith.mulf %114, %113 : vector<8x128xf32>
    %116 = arith.maximumf %113, %115 : vector<8x128xf32>
    %c8 = arith.constant 8 : index
    %c0_42 = arith.constant 0 : index
    %117 = vector.load %arg3[%c8, %c0_42] : memref<9x128xf32, #tpu.memory_space<vmem>>, vector<1x128xf32>
    %118 = vector.broadcast %117 : vector<1x128xf32> to vector<8x128xf32>
    %119 = arith.mulf %116, %118 : vector<8x128xf32>
    %cst_43 = arith.constant dense<0.000000e+00> : vector<8xf32>
    %120 = vector.multi_reduction <add>, %119, %cst_43 [1] : vector<8x128xf32> to vector<8xf32>
    %121 = vector.shape_cast %120 : vector<8xf32> to vector<8x1xf32>
    %c0_44 = arith.constant 0 : index
    %c0_45 = arith.constant 0 : index
    %122 = memref.load %arg4[%c0_44, %c0_45] : memref<1x1xf32, #tpu.memory_space<smem>>
    %123 = vector.broadcast %122 : f32 to vector<8x1xf32>
    %124 = arith.addf %121, %123 : vector<8x1xf32>
    %c0_46 = arith.constant 0 : index
    %c0_47 = arith.constant 0 : index
    %125 = vector.load %arg5[%c0_46, %c0_47] : memref<8x1xf32, #tpu.memory_space<vmem>>, vector<8x1xf32>
    tpu.vector_store %arg5[%c0_46, %c0_47], %124 {strides = array<i32>} : memref<8x1xf32, #tpu.memory_space<vmem>>, vector<8x1xf32>,
    return
  }
  func.func @transform_0(%arg0: i32) -> (i32, i32) {
    %c0_i32 = arith.constant 0 : i32
    %c0_i32_0 = arith.constant 0 : i32
    %c0_i32_1 = arith.constant 0 : i32
    return %c0_i32, %c0_i32_0 : i32, i32
  }
  func.func @transform_1(%arg0: i32) -> (i32, i32) {
    %c0_i32 = arith.constant 0 : i32
    %c0_i32_0 = arith.constant 0 : i32
    %c0_i32_1 = arith.constant 0 : i32
    return %c0_i32, %c0_i32_0 : i32, i32
  }
  func.func @transform_2(%arg0: i32) -> (i32, i32) {
    %c0_i32 = arith.constant 0 : i32
    %c0_i32_0 = arith.constant 0 : i32
    %c0_i32_1 = arith.constant 0 : i32
    return %c0_i32, %c0_i32_0 : i32, i32
  }
  func.func @transform_3(%arg0: i32) -> (i32, i32) {
    %c0_i32 = arith.constant 0 : i32
    %c0_i32_0 = arith.constant 0 : i32
    %c0_i32_1 = arith.constant 0 : i32
    return %c0_i32, %c0_i32_0 : i32, i32
  }
  func.func @transform_4(%arg0: i32) -> (i32, i32) {
    %c0_i32 = arith.constant 0 : i32
    %c0_i32_0 = arith.constant 0 : i32
    %c0_i32_1 = arith.constant 0 : i32
    return %c0_i32, %c0_i32_0 : i32, i32
  }
}

</mosaic_0001>

<llo_original>
// kernel: forward.1
$region0: #{forward.1}
  #allocation0 [shape = 'u32[]', space=smem, size = 0x4, offset = 0x4, fixed_abs, tag = 'smem constant byte address 0x4 - core index']
  #allocation1 [shape = 'u32[144,128]{1,0:T(1,128)}', space=vmem, size = 0x12000, scoped, tag = 'internal scratch']
  #allocation2 [shape = 'f32[1,1]{1,0:T(1,128)S(6)}', space=smem, size = 0x200, scoped, tag = 'scoped memory for forward.1']
  %s0 = inlined_call_operand.vmem [shape: f32[8,128], index: 0, kind: input, shape index: {}]
  %s1 = inlined_call_operand.hbm [shape: bf16[512,128], index: 1, kind: input, shape index: {}]
  %s2 = inlined_call_operand.vmem [shape: f32[9,128], index: 2, kind: input, shape index: {}]
  %s3 = inlined_call_operand.<no memory space> [shape: f32[1,1], index: 3, kind: input, shape index: {}]
  %s4 = inlined_call_operand.vmem [shape: f32[8,1], index: 4, kind: output, shape index: {}]
  %s5 = sld [smem:[#allocation0]]
  $region30: #{forward.1} parent=0
    _
  %s7 = ssub.s32 1, %s5
  %s8 = scalar_select 0, %s7, %s5
  %9 = sst [smem:[#allocation2]] %s3
  $region1: #{forward.1} parent=0
    #allocation3 [shape = 'u8[131072]{0}', space=vmem, size = 0x20000, scoped, tag = 'input window, operand 1, single buffered']
    #allocation4 [shape = 's32[1]{0}', space=sflag, size = 0x4, scoped, tag = 'scoped memory for forward.1']
    %10 = vsyncpa [#allocation4], 0
    // Predicated region
    $region2: #{forward.1} parent=1 // pred_check
      _
    $region3: #{forward.1} parent=1 // pred_check_branch
      %12 = sbr.rel (0) target = $region5
    $region4: #{forward.1} parent=1 // pred_region
      _
    $region5: #{forward.1} parent=1 // pred_fallthru
      _
    // Predicated region
    $region6: #{forward.1} parent=1 // pred_check
      _
    $region7: #{forward.1} parent=1 // pred_check_branch
      %14 = sbr.rel (0) target = $region9
    $region8: #{forward.1} parent=1 // pred_region
      %s16 = ssub.s32 4096, 4096
      %17 = vsyncadd [#allocation4], %s16
      %s18 = sshll.u32 [#allocation3], 4
      %s19 = int_to_ptr.vmem [resolvable:$true] %s18
      %24 = dma.hbm_to_vmem [thread:$0]  %s1, 4096, %s19, [#allocation4], 64, 64, 4
    $region9: #{forward.1} parent=1 // pred_fallthru
      _
    // Predicated region
    $region10: #{forward.1} parent=1 // pred_check
      _
    $region11: #{forward.1} parent=1 // pred_check_branch
      %26 = sbr.rel (0) target = $region13
    $region12: #{forward.1} parent=1 // pred_region
      _
    $region13: #{forward.1} parent=1 // pred_fallthru
      _
    // Predicated region
    $region14: #{forward.1} parent=1 // pred_check
      _
    $region15: #{forward.1} parent=1 // pred_check_branch
      %28 = sbr.rel (0) target = $region17
    $region16: #{forward.1} parent=1 // pred_region
      _
    $region17: #{forward.1} parent=1 // pred_fallthru
      _
    // Predicated region
    $region18: #{forward.1} parent=1 // pred_check
      _
    $region19: #{forward.1} parent=1 // pred_check_branch
      %30 = sbr.rel (0) target = $region21
    $region20: #{forward.1} parent=1 // pred_region
      %31 = dma.done [#allocation4], 4096
    $region21: #{forward.1} parent=1 // pred_fallthru
      _
    %v33 = vld [vmem:[%s0] sm:$0xff]
    %v34 = vld [vmem:[#allocation3] sm:$0xf]
    %v35 = vld [vmem:[#allocation3 + $0x4] sm:$0xf]
    %v36 = vld [vmem:[#allocation3 + $0x8] sm:$0xf]
    %v37 = vld [vmem:[#allocation3 + $0xc] sm:$0xf]
    %v38 = vld [vmem:[#allocation3 + $0x10] sm:$0xf]
    %v39 = vld [vmem:[#allocation3 + $0x14] sm:$0xf]
    %v40 = vld [vmem:[#allocation3 + $0x18] sm:$0xf]
    %v41 = vld [vmem:[#allocation3 + $0x1c] sm:$0xf]
    %v42 = vld [vmem:[#allocation3 + $0x20] sm:$0xf]
    %v43 = vld [vmem:[#allocation3 + $0x24] sm:$0xf]
    %v44 = vld [vmem:[#allocation3 + $0x28] sm:$0xf]
    %v45 = vld [vmem:[#allocation3 + $0x2c] sm:$0xf]
    %v46 = vld [vmem:[#allocation3 + $0x30] sm:$0xf]
    %v47 = vld [vmem:[#allocation3 + $0x34] sm:$0xf]
    %v48 = vld [vmem:[#allocation3 + $0x38] sm:$0xf]
    %v49 = vld [vmem:[#allocation3 + $0x3c] sm:$0xf]
    %v50 = vld [vmem:[%s2] sm:$0x1]
    %v51 = vld [vmem:[%s2 + $0x1] sm:$0x1]
    %v52 = vpack.c.bf16 %v33, %v33
    %v69 = vunpack.c.l.b16 %v34
    %v70 = vunpack.c.l.b16 %v35
    %v71 = vunpack.c.l.b16 %v36
    %v72 = vunpack.c.l.b16 %v37
    %v73 = vunpack.c.l.b16 %v38
    %v74 = vunpack.c.l.b16 %v39
    %v75 = vunpack.c.l.b16 %v40
    %v76 = vunpack.c.l.b16 %v41
    %v77 = vunpack.c.l.b16 %v42
    %v78 = vunpack.c.l.b16 %v43
    %v79 = vunpack.c.l.b16 %v44
    %v80 = vunpack.c.l.b16 %v45
    %v81 = vunpack.c.l.b16 %v46
    %v82 = vunpack.c.l.b16 %v47
    %v83 = vunpack.c.l.b16 %v48
    %v84 = vunpack.c.l.b16 %v49
    %v85 = vpack.c.b16 %v70, %v69
    %v86 = vpack.c.b16 %v72, %v71
    %v87 = vpack.c.b16 %v74, %v73
    %v88 = vpack.c.b16 %v76, %v75
    %v89 = vpack.c.b16 %v78, %v77
    %v90 = vpack.c.b16 %v80, %v79
    %v91 = vpack.c.b16 %v82, %v81
    %v92 = vpack.c.b16 %v84, %v83
    %101 = vmatprep.subr.bf16.mxu0 0
    %102 = vmatpush1.bf16.msra.mxu0 %v85
    %103 = vmatprep.subr.bf16.mxu0 0
    %104 = vmatpush1.bf16.msra.mxu0 %v86
    %105 = vmatprep.subr.bf16.mxu0 0
    %106 = vmatpush1.bf16.msra.mxu0 %v87
    %107 = vmatprep.subr.bf16.mxu0 0
    %108 = vmatpush1.bf16.msra.mxu0 %v88
    %109 = vmatprep.subr.bf16.mxu0 0
    %110 = vmatpush1.bf16.msra.mxu0 %v89
    %111 = vmatprep.subr.bf16.mxu0 0
    %112 = vmatpush1.bf16.msra.mxu0 %v90
    %113 = vmatprep.subr.bf16.mxu0 0
    %114 = vmatpush1.bf16.msra.mxu0 %v91
    %115 = vmatprep.subr.bf16.mxu0 0
    %116 = vmatpush1.bf16.msra.mxu0 %v92
    %117 = vmatprep.subr.bf16.mxu0 0
    %118 = vmatpush1.bf16.msra.mxu0 0
    %119 = vmatprep.subr.bf16.mxu0 0
    %120 = vmatpush1.bf16.msra.mxu0 0
    %121 = vmatprep.subr.bf16.mxu0 0
    %122 = vmatpush1.bf16.msra.mxu0 0
    %123 = vmatprep.subr.bf16.mxu0 0
    %124 = vmatpush1.bf16.msra.mxu0 0
    %125 = vmatprep.subr.bf16.mxu0 0
    %126 = vmatpush1.bf16.msra.mxu0 0
    %127 = vmatprep.subr.bf16.mxu0 0
    %128 = vmatpush1.bf16.msra.mxu0 0
    %129 = vmatprep.subr.bf16.mxu0 0
    %130 = vmatpush1.bf16.msra.mxu0 0
    %131 = vmatprep.subr.bf16.mxu0 0
    %132 = vmatpush1.bf16.msra.mxu0 0
    %133 = vmatprep.mubr.bf16.mxu0 0
    %134 = vmatmul.mubr.bf16.gmra.mrb[0].mxu0 %v52
    %v135 = vpop.f32.mrb[0].mxu0
    %v136 = vadd.f32 0.0, %v135
    %v137 = vpop.f32.mrb[0].mxu0
    %v138 = vpop.f32.mrb[0].mxu0
    %v139 = vpop.f32.mrb[0].mxu0
    %140 = vdwg.mxu0
    %v141 = vrot.slane %v136, 4
    %v142 = vadd.f32 %v136, %v141
    %v143 = vrot.slane %v142, 2
    %v144 = vadd.f32 %v142, %v143
    %v145 = vrot.slane %v144, 1
    %v146 = vadd.f32 %v144, %v145
    %v147 = vmul.f32 %v136, %v136
    %v148 = vrot.slane %v147, 4
    %v149 = vadd.f32 %v147, %v148
    %v150 = vrot.slane %v149, 2
    %v151 = vadd.f32 %v149, %v150
    %v152 = vrot.slane %v151, 1
    %v153 = vadd.f32 %v151, %v152
    %v154 = vmul.f32 %v146, 0.125
    %v155 = vmul.f32 %v153, 0.125
    %v156 = vmul.f32 %v154, %v154
    %v157 = vsub.f32 %v155, %v156
    %v158 = vadd.f32 %v157, 1e-05
    %v159 = vrsqrt.pop %v158
    %v160 = vmul.f32 %v50, %v159
    %v161 = vmul.f32 %v154, %v160
    %v162 = vsub.f32 %v51, %v161
    %v163 = vlaneseq
    %v164 = vshrl.u32 %v163, 7
    %v165 = vsub.s32 0, %v164
    %v166 = vrot.slane %v160, %v165
    %v167 = vmul.f32 %v136, %v166
    %v168 = vlaneseq
    %v169 = vshrl.u32 %v168, 7
    %v170 = vsub.s32 0, %v169
    %v171 = vrot.slane %v162, %v170
    %v172 = vadd.f32 %v167, %v171
    %v173 = vmul.f32 %v172, 0.01
    %v174 = vmax.f32 %v172, %v173
    %v175 = vld [vmem:[#allocation3 + $0x40] sm:$0xf]
    %v176 = vld [vmem:[#allocation3 + $0x44] sm:$0xf]
    %v177 = vld [vmem:[#allocation3 + $0x48] sm:$0xf]
    %v178 = vld [vmem:[#allocation3 + $0x4c] sm:$0xf]
    %v179 = vld [vmem:[#allocation3 + $0x50] sm:$0xf]
    %v180 = vld [vmem:[#allocation3 + $0x54] sm:$0xf]
    %v181 = vld [vmem:[#allocation3 + $0x58] sm:$0xf]
    %v182 = vld [vmem:[#allocation3 + $0x5c] sm:$0xf]
    %v183 = vld [vmem:[#allocation3 + $0x60] sm:$0xf]
    %v184 = vld [vmem:[#allocation3 + $0x64] sm:$0xf]
    %v185 = vld [vmem:[#allocation3 + $0x68] sm:$0xf]
    %v186 = vld [vmem:[#allocation3 + $0x6c] sm:$0xf]
    %v187 = vld [vmem:[#allocation3 + $0x70] sm:$0xf]
    %v188 = vld [vmem:[#allocation3 + $0x74] sm:$0xf]
    %v189 = vld [vmem:[#allocation3 + $0x78] sm:$0xf]
    %v190 = vld [vmem:[#allocation3 + $0x7c] sm:$0xf]
    %v191 = vld [vmem:[%s2 + $0x2] sm:$0x1]
    %v192 = vld [vmem:[%s2 + $0x3] sm:$0x1]
    %v193 = vpack.c.bf16 %v174, %v174
    %v210 = vunpack.c.l.b16 %v175
    %v211 = vunpack.c.l.b16 %v176
    %v212 = vunpack.c.l.b16 %v177
    %v213 = vunpack.c.l.b16 %v178
    %v214 = vunpack.c.l.b16 %v179
    %v215 = vunpack.c.l.b16 %v180
    %v216 = vunpack.c.l.b16 %v181
    %v217 = vunpack.c.l.b16 %v182
    %v218 = vunpack.c.l.b16 %v183
    %v219 = vunpack.c.l.b16 %v184
    %v220 = vunpack.c.l.b16 %v185
    %v221 = vunpack.c.l.b16 %v186
    %v222 = vunpack.c.l.b16 %v187
    %v223 = vunpack.c.l.b16 %v188
    %v224 = vunpack.c.l.b16 %v189
    %v225 = vunpack.c.l.b16 %v190
    %v226 = vpack.c.b16 %v211, %v210
    %v227 = vpack.c.b16 %v213, %v212
    %v228 = vpack.c.b16 %v215, %v214
    %v229 = vpack.c.b16 %v217, %v216
    %v230 = vpack.c.b16 %v219, %v218
    %v231 = vpack.c.b16 %v221, %v220
    %v232 = vpack.c.b16 %v223, %v222
    %v233 = vpack.c.b16 %v225, %v224
    %242 = vmatprep.subr.bf16.mxu0 0
    %243 = vmatpush1.bf16.msra.mxu0 %v226
    %244 = vmatprep.subr.bf16.mxu0 0
    %245 = vmatpush1.bf16.msra.mxu0 %v227
    %246 = vmatprep.subr.bf16.mxu0 0
    %247 = vmatpush1.bf16.msra.mxu0 %v228
    %248 = vmatprep.subr.bf16.mxu0 0
    %249 = vmatpush1.bf16.msra.mxu0 %v229
    %250 = vmatprep.subr.bf16.mxu0 0
    %251 = vmatpush1.bf16.msra.mxu0 %v230
    %252 = vmatprep.subr.bf16.mxu0 0
    %253 = vmatpush1.bf16.msra.mxu0 %v231
    %254 = vmatprep.subr.bf16.mxu0 0
    %255 = vmatpush1.bf16.msra.mxu0 %v232
    %256 = vmatprep.subr.bf16.mxu0 0
    %257 = vmatpush1.bf16.msra.mxu0 %v233
    %258 = vmatprep.subr.bf16.mxu0 0
    %259 = vmatpush1.bf16.msra.mxu0 0
    %260 = vmatprep.subr.bf16.mxu0 0
    %261 = vmatpush1.bf16.msra.mxu0 0
    %262 = vmatprep.subr.bf16.mxu0 0
    %263 = vmatpush1.bf16.msra.mxu0 0
    %264 = vmatprep.subr.bf16.mxu0 0
    %265 = vmatpush1.bf16.msra.mxu0 0
    %266 = vmatprep.subr.bf16.mxu0 0
    %267 = vmatpush1.bf16.msra.mxu0 0
    %268 = vmatprep.subr.bf16.mxu0 0
    %269 = vmatpush1.bf16.msra.mxu0 0
    %270 = vmatprep.subr.bf16.mxu0 0
    %271 = vmatpush1.bf16.msra.mxu0 0
    %272 = vmatprep.subr.bf16.mxu0 0
    %273 = vmatpush1.bf16.msra.mxu0 0
    %274 = vmatprep.mubr.bf16.mxu0 0
    %275 = vmatmul.mubr.bf16.gmra.mrb[0].mxu0 %v193
    %v276 = vpop.f32.mrb[0].mxu0
    %v277 = vadd.f32 0.0, %v276
    %v278 = vpop.f32.mrb[0].mxu0
    %v279 = vpop.f32.mrb[0].mxu0
    %v280 = vpop.f32.mrb[0].mxu0
    %281 = vdwg.mxu0
    %v282 = vrot.slane %v277, 4
    %v283 = vadd.f32 %v277, %v282
    %v284 = vrot.slane %v283, 2
    %v285 = vadd.f32 %v283, %v284
    %v286 = vrot.slane %v285, 1
    %v287 = vadd.f32 %v285, %v286
    %v288 = vmul.f32 %v277, %v277
    %v289 = vrot.slane %v288, 4
    %v290 = vadd.f32 %v288, %v289
    %v291 = vrot.slane %v290, 2
    %v292 = vadd.f32 %v290, %v291
    %v293 = vrot.slane %v292, 1
    %v294 = vadd.f32 %v292, %v293
    %v295 = vmul.f32 %v287, 0.125
    %v296 = vmul.f32 %v294, 0.125
    %v297 = vmul.f32 %v295, %v295
    %v298 = vsub.f32 %v296, %v297
    %v299 = vadd.f32 %v298, 1e-05
    %v300 = vrsqrt.pop %v299
    %v301 = vmul.f32 %v191, %v300
    %v302 = vmul.f32 %v295, %v301
    %v303 = vsub.f32 %v192, %v302
    %v304 = vlaneseq
    %v305 = vshrl.u32 %v304, 7
    %v306 = vsub.s32 0, %v305
    %v307 = vrot.slane %v301, %v306
    %v308 = vmul.f32 %v277, %v307
    %v309 = vlaneseq
    %v310 = vshrl.u32 %v309, 7
    %v311 = vsub.s32 0, %v310
    %v312 = vrot.slane %v303, %v311
    %v313 = vadd.f32 %v308, %v312
    %v314 = vmul.f32 %v313, 0.01
    %v315 = vmax.f32 %v313, %v314
    %v316 = vld [vmem:[#allocation3 + $0x80] sm:$0xf]
    %v317 = vld [vmem:[#allocation3 + $0x84] sm:$0xf]
    %v318 = vld [vmem:[#allocation3 + $0x88] sm:$0xf]
    %v319 = vld [vmem:[#allocation3 + $0x8c] sm:$0xf]
    %v320 = vld [vmem:[#allocation3 + $0x90] sm:$0xf]
    %v321 = vld [vmem:[#allocation3 + $0x94] sm:$0xf]
    %v322 = vld [vmem:[#allocation3 + $0x98] sm:$0xf]
    %v323 = vld [vmem:[#allocation3 + $0x9c] sm:$0xf]
    %v324 = vld [vmem:[#allocation3 + $0xa0] sm:$0xf]
    %v325 = vld [vmem:[#allocation3 + $0xa4] sm:$0xf]
    %v326 = vld [vmem:[#allocation3 + $0xa8] sm:$0xf]
    %v327 = vld [vmem:[#allocation3 + $0xac] sm:$0xf]
    %v328 = vld [vmem:[#allocation3 + $0xb0] sm:$0xf]
    %v329 = vld [vmem:[#allocation3 + $0xb4] sm:$0xf]
    %v330 = vld [vmem:[#allocation3 + $0xb8] sm:$0xf]
    %v331 = vld [vmem:[#allocation3 + $0xbc] sm:$0xf]
    %v332 = vld [vmem:[%s2 + $0x4] sm:$0x1]
    %v333 = vld [vmem:[%s2 + $0x5] sm:$0x1]
    %v334 = vpack.c.bf16 %v315, %v315
    %v351 = vunpack.c.l.b16 %v316
    %v352 = vunpack.c.l.b16 %v317
    %v353 = vunpack.c.l.b16 %v318
    %v354 = vunpack.c.l.b16 %v319
    %v355 = vunpack.c.l.b16 %v320
    %v356 = vunpack.c.l.b16 %v321
    %v357 = vunpack.c.l.b16 %v322
    %v358 = vunpack.c.l.b16 %v323
    %v359 = vunpack.c.l.b16 %v324
    %v360 = vunpack.c.l.b16 %v325
    %v361 = vunpack.c.l.b16 %v326
    %v362 = vunpack.c.l.b16 %v327
    %v363 = vunpack.c.l.b16 %v328
    %v364 = vunpack.c.l.b16 %v329
    %v365 = vunpack.c.l.b16 %v330
    %v366 = vunpack.c.l.b16 %v331
    %v367 = vpack.c.b16 %v352, %v351
    %v368 = vpack.c.b16 %v354, %v353
    %v369 = vpack.c.b16 %v356, %v355
    %v370 = vpack.c.b16 %v358, %v357
    %v371 = vpack.c.b16 %v360, %v359
    %v372 = vpack.c.b16 %v362, %v361
    %v373 = vpack.c.b16 %v364, %v363
    %v374 = vpack.c.b16 %v366, %v365
    %383 = vmatprep.subr.bf16.mxu0 0
    %384 = vmatpush1.bf16.msra.mxu0 %v367
    %385 = vmatprep.subr.bf16.mxu0 0
    %386 = vmatpush1.bf16.msra.mxu0 %v368
    %387 = vmatprep.subr.bf16.mxu0 0
    %388 = vmatpush1.bf16.msra.mxu0 %v369
    %389 = vmatprep.subr.bf16.mxu0 0
    %390 = vmatpush1.bf16.msra.mxu0 %v370
    %391 = vmatprep.subr.bf16.mxu0 0
    %392 = vmatpush1.bf16.msra.mxu0 %v371
    %393 = vmatprep.subr.bf16.mxu0 0
    %394 = vmatpush1.bf16.msra.mxu0 %v372
    %395 = vmatprep.subr.bf16.mxu0 0
    %396 = vmatpush1.bf16.msra.mxu0 %v373
    %397 = vmatprep.subr.bf16.mxu0 0
    %398 = vmatpush1.bf16.msra.mxu0 %v374
    %399 = vmatprep.subr.bf16.mxu0 0
    %400 = vmatpush1.bf16.msra.mxu0 0
    %401 = vmatprep.subr.bf16.mxu0 0
    %402 = vmatpush1.bf16.msra.mxu0 0
    %403 = vmatprep.subr.bf16.mxu0 0
    %404 = vmatpush1.bf16.msra.mxu0 0
    %405 = vmatprep.subr.bf16.mxu0 0
    %406 = vmatpush1.bf16.msra.mxu0 0
    %407 = vmatprep.subr.bf16.mxu0 0
    %408 = vmatpush1.bf16.msra.mxu0 0
    %409 = vmatprep.subr.bf16.mxu0 0
    %410 = vmatpush1.bf16.msra.mxu0 0
    %411 = vmatprep.subr.bf16.mxu0 0
    %412 = vmatpush1.bf16.msra.mxu0 0
    %413 = vmatprep.subr.bf16.mxu0 0
    %414 = vmatpush1.bf16.msra.mxu0 0
    %415 = vmatprep.mubr.bf16.mxu0 0
    %416 = vmatmul.mubr.bf16.gmra.mrb[0].mxu0 %v334
    %v417 = vpop.f32.mrb[0].mxu0
    %v418 = vadd.f32 0.0, %v417
    %v419 = vpop.f32.mrb[0].mxu0
    %v420 = vpop.f32.mrb[0].mxu0
    %v421 = vpop.f32.mrb[0].mxu0
    %422 = vdwg.mxu0
    %v423 = vrot.slane %v418, 4
    %v424 = vadd.f32 %v418, %v423
    %v425 = vrot.slane %v424, 2
    %v426 = vadd.f32 %v424, %v425
    %v427 = vrot.slane %v426, 1
    %v428 = vadd.f32 %v426, %v427
    %v429 = vmul.f32 %v418, %v418
    %v430 = vrot.slane %v429, 4
    %v431 = vadd.f32 %v429, %v430
    %v432 = vrot.slane %v431, 2
    %v433 = vadd.f32 %v431, %v432
    %v434 = vrot.slane %v433, 1
    %v435 = vadd.f32 %v433, %v434
    %v436 = vmul.f32 %v428, 0.125
    %v437 = vmul.f32 %v435, 0.125
    %v438 = vmul.f32 %v436, %v436
    %v439 = vsub.f32 %v437, %v438
    %v440 = vadd.f32 %v439, 1e-05
    %v441 = vrsqrt.pop %v440
    %v442 = vmul.f32 %v332, %v441
    %v443 = vmul.f32 %v436, %v442
    %v444 = vsub.f32 %v333, %v443
    %v445 = vlaneseq
    %v446 = vshrl.u32 %v445, 7
    %v447 = vsub.s32 0, %v446
    %v448 = vrot.slane %v442, %v447
    %v449 = vmul.f32 %v418, %v448
    %v450 = vlaneseq
    %v451 = vshrl.u32 %v450, 7
    %v452 = vsub.s32 0, %v451
    %v453 = vrot.slane %v444, %v452
    %v454 = vadd.f32 %v449, %v453
    %v455 = vmul.f32 %v454, 0.01
    %v456 = vmax.f32 %v454, %v455
    %v457 = vld [vmem:[#allocation3 + $0xc0] sm:$0xf]
    %v458 = vld [vmem:[#allocation3 + $0xc4] sm:$0xf]
    %v459 = vld [vmem:[#allocation3 + $0xc8] sm:$0xf]
    %v460 = vld [vmem:[#allocation3 + $0xcc] sm:$0xf]
    %v461 = vld [vmem:[#allocation3 + $0xd0] sm:$0xf]
    %v462 = vld [vmem:[#allocation3 + $0xd4] sm:$0xf]
    %v463 = vld [vmem:[#allocation3 + $0xd8] sm:$0xf]
    %v464 = vld [vmem:[#allocation3 + $0xdc] sm:$0xf]
    %v465 = vld [vmem:[#allocation3 + $0xe0] sm:$0xf]
    %v466 = vld [vmem:[#allocation3 + $0xe4] sm:$0xf]
    %v467 = vld [vmem:[#allocation3 + $0xe8] sm:$0xf]
    %v468 = vld [vmem:[#allocation3 + $0xec] sm:$0xf]
    %v469 = vld [vmem:[#allocation3 + $0xf0] sm:$0xf]
    %v470 = vld [vmem:[#allocation3 + $0xf4] sm:$0xf]
    %v471 = vld [vmem:[#allocation3 + $0xf8] sm:$0xf]
    %v472 = vld [vmem:[#allocation3 + $0xfc] sm:$0xf]
    %v473 = vld [vmem:[%s2 + $0x6] sm:$0x1]
    %v474 = vld [vmem:[%s2 + $0x7] sm:$0x1]
    %v475 = vpack.c.bf16 %v456, %v456
    %v492 = vunpack.c.l.b16 %v457
    %v493 = vunpack.c.l.b16 %v458
    %v494 = vunpack.c.l.b16 %v459
    %v495 = vunpack.c.l.b16 %v460
    %v496 = vunpack.c.l.b16 %v461
    %v497 = vunpack.c.l.b16 %v462
    %v498 = vunpack.c.l.b16 %v463
    %v499 = vunpack.c.l.b16 %v464
    %v500 = vunpack.c.l.b16 %v465
    %v501 = vunpack.c.l.b16 %v466
    %v502 = vunpack.c.l.b16 %v467
    %v503 = vunpack.c.l.b16 %v468
    %v504 = vunpack.c.l.b16 %v469
    %v505 = vunpack.c.l.b16 %v470
    %v506 = vunpack.c.l.b16 %v471
    %v507 = vunpack.c.l.b16 %v472
    %v508 = vpack.c.b16 %v493, %v492
    %v509 = vpack.c.b16 %v495, %v494
    %v510 = vpack.c.b16 %v497, %v496
    %v511 = vpack.c.b16 %v499, %v498
    %v512 = vpack.c.b16 %v501, %v500
    %v513 = vpack.c.b16 %v503, %v502
    %v514 = vpack.c.b16 %v505, %v504
    %v515 = vpack.c.b16 %v507, %v506
    %524 = vmatprep.subr.bf16.mxu0 0
    %525 = vmatpush1.bf16.msra.mxu0 %v508
    %526 = vmatprep.subr.bf16.mxu0 0
    %527 = vmatpush1.bf16.msra.mxu0 %v509
    %528 = vmatprep.subr.bf16.mxu0 0
    %529 = vmatpush1.bf16.msra.mxu0 %v510
    %530 = vmatprep.subr.bf16.mxu0 0
    %531 = vmatpush1.bf16.msra.mxu0 %v511
    %532 = vmatprep.subr.bf16.mxu0 0
    %533 = vmatpush1.bf16.msra.mxu0 %v512
    %534 = vmatprep.subr.bf16.mxu0 0
    %535 = vmatpush1.bf16.msra.mxu0 %v513
    %536 = vmatprep.subr.bf16.mxu0 0
    %537 = vmatpush1.bf16.msra.mxu0 %v514
    %538 = vmatprep.subr.bf16.mxu0 0
    %539 = vmatpush1.bf16.msra.mxu0 %v515
    %540 = vmatprep.subr.bf16.mxu0 0
    %541 = vmatpush1.bf16.msra.mxu0 0
    %542 = vmatprep.subr.bf16.mxu0 0
    %543 = vmatpush1.bf16.msra.mxu0 0
    %544 = vmatprep.subr.bf16.mxu0 0
    %545 = vmatpush1.bf16.msra.mxu0 0
    %546 = vmatprep.subr.bf16.mxu0 0
    %547 = vmatpush1.bf16.msra.mxu0 0
    %548 = vmatprep.subr.bf16.mxu0 0
    %549 = vmatpush1.bf16.msra.mxu0 0
    %550 = vmatprep.subr.bf16.mxu0 0
    %551 = vmatpush1.bf16.msra.mxu0 0
    %552 = vmatprep.subr.bf16.mxu0 0
    %553 = vmatpush1.bf16.msra.mxu0 0
    %554 = vmatprep.subr.bf16.mxu0 0
    %555 = vmatpush1.bf16.msra.mxu0 0
    %556 = vmatprep.mubr.bf16.mxu0 0
    %557 = vmatmul.mubr.bf16.gmra.mrb[0].mxu0 %v475
    %v558 = vpop.f32.mrb[0].mxu0
    %v559 = vadd.f32 0.0, %v558
    %v560 = vpop.f32.mrb[0].mxu0
    %v561 = vpop.f32.mrb[0].mxu0
    %v562 = vpop.f32.mrb[0].mxu0
    %563 = vdwg.mxu0
    %v564 = vrot.slane %v559, 4
    %v565 = vadd.f32 %v559, %v564
    %v566 = vrot.slane %v565, 2
    %v567 = vadd.f32 %v565, %v566
    %v568 = vrot.slane %v567, 1
    %v569 = vadd.f32 %v567, %v568
    %v570 = vmul.f32 %v559, %v559
    %v571 = vrot.slane %v570, 4
    %v572 = vadd.f32 %v570, %v571
    %v573 = vrot.slane %v572, 2
    %v574 = vadd.f32 %v572, %v573
    %v575 = vrot.slane %v574, 1
    %v576 = vadd.f32 %v574, %v575
    %v577 = vmul.f32 %v569, 0.125
    %v578 = vmul.f32 %v576, 0.125
    %v579 = vmul.f32 %v577, %v577
    %v580 = vsub.f32 %v578, %v579
    %v581 = vadd.f32 %v580, 1e-05
    %v582 = vrsqrt.pop %v581
    %v583 = vmul.f32 %v473, %v582
    %v584 = vmul.f32 %v577, %v583
    %v585 = vsub.f32 %v474, %v584
    %v586 = vlaneseq
    %v587 = vshrl.u32 %v586, 7
    %v588 = vsub.s32 0, %v587
    %v589 = vrot.slane %v583, %v588
    %v590 = vmul.f32 %v559, %v589
    %v591 = vlaneseq
    %v592 = vshrl.u32 %v591, 7
    %v593 = vsub.s32 0, %v592
    %v594 = vrot.slane %v585, %v593
    %v595 = vadd.f32 %v590, %v594
    %v596 = vmul.f32 %v595, 0.01
    %v597 = vmax.f32 %v595, %v596
    %v598 = vld [vmem:[%s2 + $0x8] sm:$0x1]
    %v599 = vlaneseq
    %v600 = vshrl.u32 %v599, 7
    %v601 = vsub.s32 0, %v600
    %v602 = vrot.slane %v598, %v601
    %v603 = vmul.f32 %v597, %v602
    %604 = vadd.xlane.f32.xlu0 %v603
    %v605 = vpop.xlane.xlu0 %604
    %s606 = sld [smem:[#allocation2]]
    %v607 = vstv %s606
    %v608 = vadd.f32 %v605, %v607
    %vm609 = vcmask 7168
    %610 = vst.msk [vmem:[%s4] sm:$0xff] %vm609, %v608
    // Predicated region
    $region22: #{forward.1} parent=1 // pred_check
      _
    $region23: #{forward.1} parent=1 // pred_check_branch
      %612 = sbr.rel (0) target = $region25
    $region24: #{forward.1} parent=1 // pred_region
      _
    $region25: #{forward.1} parent=1 // pred_fallthru
      _
    // Predicated region
    $region26: #{forward.1} parent=1 // pred_check
      _
    $region27: #{forward.1} parent=1 // pred_check_branch
      %614 = sbr.rel (0) target = $region29
    $region28: #{forward.1} parent=1 // pred_region
      _
    $region29: #{forward.1} parent=1 // pred_fallthru
      _
    %615 = vsyncpa [#allocation4], 1

</llo_original>
